<compile_context>
chip_gen: v7x
topology: tpu7x:2x2x1
jax: 0.10.0
libtpu: 0.0.40
codegen_flags: <defaults>
</compile_context>

<pallas_src>
import functools

import jax
import jax.numpy as jnp
from jax.experimental import pallas as pl
from jax.experimental.pallas import tpu as pltpu

_VMEM_FILL = 0.85  # fraction of the scoped-VMEM budget we let block buffers use


def _round_up(x, m):
    return (x + m - 1) // m * m


@functools.lru_cache(maxsize=None)
def _tpu_vmem_bytes():
    """Physical VMEM per TensorCore (conservative 64 MiB fallback)."""
    try:
        info = pltpu.get_tpu_info()
        v = getattr(info, "vmem_capacity_bytes", None)
        if v:
            return int(v)
    except Exception:
        pass
    return 64 * 1024 * 1024


@functools.lru_cache(maxsize=None)
def _tpu_num_tensorcores():
    """TensorCores per chip (heuristic: 64 MiB-VMEM parts == v7x == 2 TCs)."""
    try:
        info = pltpu.get_tpu_info()
        for name in ("num_cores", "tensorcore_count", "num_tensorcores", "core_count"):
            v = getattr(info, name, None)
            if v:
                return int(v)
    except Exception:
        pass
    return 2 if _tpu_vmem_bytes() <= 64 * 1024 * 1024 else 1


def _tpu_vmem_limit_bytes():
    return min(int(_tpu_vmem_bytes() * 0.75), 100 * 1024 * 1024)


def _pipeline_vmem_bytes(bm, tile_enc, num_k, d_in_p, mm_bytes, out_bytes, acc_needed):
    """Estimate of the pipeline's VMEM block buffers for a given tiling."""
    wbuf = 1 if num_k == 1 else 2          # resident weights are single-buffered
    total = 2 * bm * d_in_p * mm_bytes      # x tile (double-buffered)
    total += wbuf * d_in_p * tile_enc * mm_bytes   # W_enc^T tile
    total += wbuf * max(tile_enc, 128) * 4         # b_enc tile (f32)
    total += wbuf * tile_enc * d_in_p * mm_bytes   # W_dec^T tile
    total += d_in_p * 4                             # b_dec (Buffered(1))
    total += 2 * bm * tile_enc * out_bytes          # encoded out tile
    total += 2 * bm * d_in_p * out_bytes            # decoded out tile
    if acc_needed:
        total += bm * d_in_p * 4                    # f32 accumulator scratch
    return total


# --------------------------------------------------------------------------- #
# Kernels
# --------------------------------------------------------------------------- #
def _sae_kernel_fused(x_ref, we_ref, be_ref, wd_ref, bd_ref, enc_ref, dec_ref):
    """f32 output: decoder accumulates directly into the VMEM-resident dec block.

    x_ref  : (bm, D_in_p)           mm_dtype
    we_ref : (1, D_in_p, tile_enc)  mm_dtype  (tile-contiguous encoder weight)
    be_ref : (1, tile_enc)          f32
    wd_ref : (tile_enc, D_in_p)     mm_dtype
    bd_ref : (1, D_in_p)            f32
    enc_ref: (bm, tile_enc)         out (written every k step)
    dec_ref: (bm, D_in_p)           f32 out, block index constant across k
    """
    k = pl.program_id(1)

    @pl.when(k == 0)
    def _init():
        dec_ref[...] = jnp.zeros_like(dec_ref)

    pre = jnp.dot(x_ref[...], we_ref[0],
                  preferred_element_type=jnp.float32) + be_ref[...]
    enc = jnp.maximum(pre, 0.0)
    enc_ref[...] = enc.astype(enc_ref.dtype)

    dec_ref[...] += jnp.dot(enc.astype(wd_ref.dtype), wd_ref[...],
                            preferred_element_type=jnp.float32)

    @pl.when(k == pl.num_programs(1) - 1)
    def _finalize():
        dec_ref[...] += bd_ref[...]


def _sae_kernel_scratch(x_ref, we_ref, be_ref, wd_ref, bd_ref, enc_ref, dec_ref,
                        acc_ref):
    """Non-f32 output: accumulate in an f32 VMEM scratch, cast at the last k step."""
    k = pl.program_id(1)

    @pl.when(k == 0)
    def _init():
        acc_ref[...] = jnp.zeros_like(acc_ref)

    pre = jnp.dot(x_ref[...], we_ref[0],
                  preferred_element_type=jnp.float32) + be_ref[...]
    enc = jnp.maximum(pre, 0.0)
    enc_ref[...] = enc.astype(enc_ref.dtype)

    acc_ref[...] += jnp.dot(enc.astype(wd_ref.dtype), wd_ref[...],
                            preferred_element_type=jnp.float32)

    @pl.when(k == pl.num_programs(1) - 1)
    def _finalize():
        dec_ref[...] = (acc_ref[...] + bd_ref[...]).astype(dec_ref.dtype)


# --------------------------------------------------------------------------- #
# One-time parameter preparation (NOT in the hot path)
# --------------------------------------------------------------------------- #
def prepare_sae_params(w_enc, b_enc, w_dec, b_dec, *, tile_enc=None,
                       matmul_dtype=jnp.bfloat16):
    """Convert torch-layout weights once.

    w_enc: (D_enc, D_in) torch Linear (out, in);  w_dec: (D_in, D_enc).
    Transposes to (in, out), pads feature dims to multiples of 128, optionally
    casts matmul operands (default bf16; biases/epilogue stay f32), and stores
    W_enc^T tile-contiguously as (num_k, D_in_p, tile_enc).

    tile_enc=None -> device-aware choice: whole-encoding tile (weights resident
    in VMEM for the entire grid) when it fits the per-generation budget, else a
    512-wide streamed tile.
    """
    w_enc = jnp.asarray(w_enc)
    w_dec = jnp.asarray(w_dec)
    d_enc, d_in = w_enc.shape
    assert w_dec.shape == (d_in, d_enc)

    mm_dtype = jnp.dtype(matmul_dtype)
    mm_bytes = mm_dtype.itemsize

    d_in_p = _round_up(d_in, 128)
    d_enc_p0 = _round_up(d_enc, 128)

    if tile_enc is None:
        vmem_limit = _tpu_vmem_limit_bytes()
        bm_probe = 512 if _tpu_vmem_bytes() > (64 << 20) else 256
        resident = _pipeline_vmem_bytes(bm_probe, d_enc_p0, 1, d_in_p,
                                        mm_bytes, 4, acc_needed=False)
        tile_enc = d_enc_p0 if resident <= int(_VMEM_FILL * vmem_limit) else 512

    tile_enc = _round_up(min(int(tile_enc), d_enc_p0), 128)
    d_enc_p = _round_up(d_enc, tile_enc)
    num_k = d_enc_p // tile_enc

    we_full = jnp.zeros((d_in_p, d_enc_p), mm_dtype).at[:d_in, :d_enc].set(
        w_enc.T.astype(mm_dtype))
    # Tile-contiguous layout: one large linear DMA per encoder-weight step.
    we_t = we_full.reshape(d_in_p, num_k, tile_enc).transpose(1, 0, 2)
    wd_t = jnp.zeros((d_enc_p, d_in_p), mm_dtype).at[:d_enc, :d_in].set(
        w_dec.T.astype(mm_dtype))
    be = jnp.zeros((1, d_enc_p), jnp.float32).at[0, :d_enc].set(
        jnp.asarray(b_enc).astype(jnp.float32))
    bd = jnp.zeros((1, d_in_p), jnp.float32).at[0, :d_in].set(
        jnp.asarray(b_dec).astype(jnp.float32))

    return dict(we_t=we_t, be=be, wd_t=wd_t, bd=bd,
                d_in=int(d_in), d_enc=int(d_enc), tile_enc=int(tile_enc))


# --------------------------------------------------------------------------- #
# Forward
# --------------------------------------------------------------------------- #
@functools.partial(jax.jit, static_argnames=("d_in", "d_enc", "tile_enc", "block_m"))
def _sae_forward(x, we_t, be, wd_t, bd, *, d_in, d_enc, tile_enc, block_m):
    B = x.shape[0]
    assert x.shape[1] == d_in
    out_dtype = x.dtype
    mm_dtype = we_t.dtype
    num_k, d_in_p, _ = we_t.shape
    d_enc_p = num_k * tile_enc

    mm_bytes = jnp.dtype(mm_dtype).itemsize
    out_bytes = jnp.dtype(out_dtype).itemsize
    acc_needed = out_dtype != jnp.float32

    vmem_cap = _tpu_vmem_bytes()
    vmem_limit = _tpu_vmem_limit_bytes()
    two_tc = _tpu_num_tensorcores() >= 2

    # Batch tile: generation-default, clamped to the (padded) batch, split in
    # two on 2-TC parts so the parallel m axis shards across both TensorCores,
    # then shrunk until the pipeline block buffers fit the VMEM budget.
    if block_m is None:
        block_m = 512 if vmem_cap > (64 << 20) else 256
    bm = _round_up(min(int(block_m), _round_up(B, 8)), 8)
    if two_tc and B > 8:
        bm = min(bm, _round_up((B + 1) // 2, 8))
    while bm > 8 and _pipeline_vmem_bytes(
            bm, tile_enc, num_k, d_in_p, mm_bytes, out_bytes, acc_needed
    ) > int(_VMEM_FILL * vmem_limit):
        bm = max(8, _round_up(bm // 2, 8))

    B_p = _round_up(B, bm)
    num_m = B_p // bm
    grid = (num_m, num_k)

    xp = x.astype(mm_dtype)
    if (B_p, d_in_p) != (B, d_in):
        xp = jnp.zeros((B_p, d_in_p), mm_dtype).at[:B, :d_in].set(xp)

    # Grid-constant blocks (resident weights / decoder bias) are single-buffered.
    const_w = num_k == 1

    def wspec(shape, index_map):
        if const_w:
            return pl.BlockSpec(shape, index_map, pipeline_mode=pl.Buffered(1))
        return pl.BlockSpec(shape, index_map)

    in_specs = [
        pl.BlockSpec((bm, d_in_p), lambda i, k: (i, 0)),                 # x tile
        wspec((1, d_in_p, tile_enc), lambda i, k: (k, 0, 0)),            # W_enc^T
        wspec((1, tile_enc), lambda i, k: (0, k)),                       # b_enc
        wspec((tile_enc, d_in_p), lambda i, k: (k, 0)),                  # W_dec^T
        pl.BlockSpec((1, d_in_p), lambda i, k: (0, 0),
                     pipeline_mode=pl.Buffered(1)),                      # b_dec
    ]
    out_specs = [
        pl.BlockSpec((bm, tile_enc), lambda i, k: (i, k)),               # encoded
        pl.BlockSpec((bm, d_in_p), lambda i, k: (i, 0)),                 # decoded
    ]

    if acc_needed:
        kernel = _sae_kernel_scratch
        scratch_shapes = [pltpu.VMEM((bm, d_in_p), jnp.float32)]
    else:
        kernel = _sae_kernel_fused       # accumulate directly into decoded block
        scratch_shapes = []

    weight_streams = 1 if num_k == 1 else num_m
    cost = pl.CostEstimate(
        flops=4 * B_p * d_in_p * d_enc_p,                       # two matmuls
        transcendentals=0,
        bytes_accessed=int(
            B_p * d_in_p * mm_bytes                              # x
            + weight_streams * 2 * d_in_p * d_enc_p * mm_bytes   # weights
            + weight_streams * (d_enc_p + d_in_p) * 4            # biases
            + B_p * d_enc_p * out_bytes                          # encoded
            + B_p * d_in_p * out_bytes),                         # decoded
    )

    encoded, decoded = pl.pallas_call(
        kernel,
        out_shape=(jax.ShapeDtypeStruct((B_p, d_enc_p), out_dtype),
                   jax.ShapeDtypeStruct((B_p, d_in_p), out_dtype)),
        grid_spec=pltpu.PrefetchScalarGridSpec(
            num_scalar_prefetch=0,
            grid=grid,
            in_specs=in_specs,
            out_specs=out_specs,
            scratch_shapes=scratch_shapes,
        ),
        compiler_params=pltpu.CompilerParams(
            dimension_semantics=("parallel", "arbitrary"),
            vmem_limit_bytes=vmem_limit,
        ),
        cost_estimate=cost,
    )(xp, we_t, be, wd_t, bd)

    return encoded[:B, :d_enc], decoded[:B, :d_in]


def sparse_autoencoder_forward(x, params, *, block_m=None):
    """x: (B, input_dim). params: output of prepare_sae_params()."""
    return _sae_forward(x, params["we_t"], params["be"], params["wd_t"], params["bd"],
                        d_in=params["d_in"], d_enc=params["d_enc"],
                        tile_enc=params["tile_enc"], block_m=block_m)


def xavier_uniform(key, shape, dtype=jnp.float32):
    """Matches torch.nn.init.xavier_uniform_ for a 2-D (fan_out, fan_in) weight."""
    fan_out, fan_in = shape
    bound = (6.0 / (fan_in + fan_out)) ** 0.5
    return jax.random.uniform(key, shape, dtype=dtype, minval=-bound, maxval=bound)


if __name__ == "__main__":
    # Small shapes, deliberately unaligned to exercise batch / feature padding.
    batch, input_dim, encoding_dim = 20, 100, 320

    key = jax.random.PRNGKey(0)
    kx, ke, kd = jax.random.split(key, 3)
    x = jax.random.normal(kx, (batch, input_dim), dtype=jnp.float32)

    # Parameter init mirroring the module: xavier_uniform_ weights, zero biases.
    w_enc = xavier_uniform(ke, (encoding_dim, input_dim))   # torch Linear (out, in)
    b_enc = jnp.zeros((encoding_dim,), jnp.float32)
    w_dec = xavier_uniform(kd, (input_dim, encoding_dim))
    b_dec = jnp.zeros((input_dim,), jnp.float32)

    # Pure-JAX reference (same semantics as the PyTorch forward).
    enc_ref = jnp.maximum(x @ w_enc.T + b_enc, 0.0)
    dec_ref = enc_ref @ w_dec.T + b_dec

    # 1) Production default: bf16 matmul operands, f32 accumulate + epilogue,
    #    device-aware resident/streamed weight choice and batch tile.
    params = prepare_sae_params(w_enc, b_enc, w_dec, b_dec)
    enc, dec = sparse_autoencoder_forward(x, params)
    jax.block_until_ready((enc, dec))
    assert enc.shape == (batch, encoding_dim) and dec.shape == (batch, input_dim)
    assert jnp.allclose(enc, enc_ref, atol=5e-2, rtol=5e-2)
    assert jnp.allclose(dec, dec_ref, atol=5e-2, rtol=5e-2)

    # 2) Full-f32 path (tight tolerance); resident weights, single k step.
    params_f32 = prepare_sae_params(w_enc, b_enc, w_dec, b_dec,
                                    matmul_dtype=jnp.float32)
    enc2, dec2 = sparse_autoencoder_forward(x, params_f32)
    jax.block_until_ready((enc2, dec2))
    assert jnp.allclose(enc2, enc_ref, atol=1e-5, rtol=1e-5)
    assert jnp.allclose(dec2, dec_ref, atol=1e-5, rtol=1e-5)

    # 3) Tiny explicit tiles -> multi-step (m, k) grid: exercises the
    #    accumulate-into-decoded init/finalize and all padding paths.
    params_small = prepare_sae_params(w_enc, b_enc, w_dec, b_dec,
                                      tile_enc=128, matmul_dtype=jnp.float32)
    enc3, dec3 = sparse_autoencoder_forward(x, params_small, block_m=8)
    jax.block_until_ready((enc3, dec3))
    assert jnp.allclose(enc3, enc_ref, atol=1e-5, rtol=1e-5)
    assert jnp.allclose(dec3, dec_ref, atol=1e-5, rtol=1e-5)

    # 4) bf16 activations/outputs -> f32 scratch-accumulator path.
    xb = x.astype(jnp.bfloat16)
    enc4, dec4 = sparse_autoencoder_forward(xb, params_small, block_m=8)
    jax.block_until_ready((enc4, dec4))
    assert jnp.allclose(enc4.astype(jnp.float32), enc_ref, atol=1e-1, rtol=5e-2)
    assert jnp.allclose(dec4.astype(jnp.float32), dec_ref, atol=1e-1, rtol=5e-2)

    print("KERNEL_OK")
</pallas_src>

<mosaic_0001>
module attributes {stable_mosaic.version = 11 : i64} {
  func.func @_sae_kernel_fused(%arg0: i32, %arg1: i32, %arg2: memref<16x128xbf16, #tpu.memory_space<vmem>>, %arg3: memref<1x128x384xbf16, #tpu.memory_space<vmem>>, %arg4: memref<1x384xf32, #tpu.memory_space<vmem>>, %arg5: memref<384x128xbf16, #tpu.memory_space<vmem>>, %arg6: memref<1x128xf32, #tpu.memory_space<vmem>>, %arg7: memref<16x384xf32, #tpu.memory_space<vmem>>, %arg8: memref<16x128xf32, #tpu.memory_space<vmem>>) attributes {dimension_semantics = [#tpu.dimension_semantics<parallel>, #tpu.dimension_semantics<arbitrary>], iteration_bounds = array<i64: 2, 1>, scalar_prefetch = 0 : i64, scratch_operands = 0 : i64, tpu.core_type = #tpu.core_type<tc>, window_params = [{transform_indices = @transform_0, window_bounds = array<i64: 16, 128>}, {pipeline_mode = #tpu.pipeline_mode<synchronous>, transform_indices = @transform_1, window_bounds = array<i64: 1, 128, 384>}, {pipeline_mode = #tpu.pipeline_mode<synchronous>, transform_indices = @transform_2, window_bounds = array<i64: 1, 384>}, {pipeline_mode = #tpu.pipeline_mode<synchronous>, transform_indices = @transform_3, window_bounds = array<i64: 384, 128>}, {pipeline_mode = #tpu.pipeline_mode<synchronous>, transform_indices = @transform_4, window_bounds = array<i64: 1, 128>}, {transform_indices = @transform_5, window_bounds = array<i64: 16, 384>}, {transform_indices = @transform_6, window_bounds = array<i64: 16, 128>}]} {
    %c0_i32 = arith.constant 0 : i32
    %0 = arith.cmpi eq, %arg1, %c0_i32 : i32
    %1 = arith.extui %0 : i1 to i32
    %c0_i32_0 = arith.constant 0 : i32
    %2 = arith.cmpi ne, %1, %c0_i32_0 : i32
    scf.if %2 {
      %cst_19 = arith.constant 0.000000e+00 : f32
      %22 = vector.broadcast %cst_19 : f32 to vector<16x128xf32>
      %c0_20 = arith.constant 0 : index
      %c0_21 = arith.constant 0 : index
      %23 = vector.load %arg8[%c0_20, %c0_21] : memref<16x128xf32, #tpu.memory_space<vmem>>, vector<16x128xf32>
      tpu.vector_store %arg8[%c0_20, %c0_21], %22 {strides = array<i32>} : memref<16x128xf32, #tpu.memory_space<vmem>>, vector<16x128xf32>,
    } else {
    }
    %c0 = arith.constant 0 : index
    %c0_1 = arith.constant 0 : index
    %3 = vector.load %arg2[%c0, %c0_1] : memref<16x128xbf16, #tpu.memory_space<vmem>>, vector<16x128xbf16>
    %c0_2 = arith.constant 0 : index
    %c0_3 = arith.constant 0 : index
    %c0_4 = arith.constant 0 : index
    %4 = vector.load %arg3[%c0_2, %c0_3, %c0_4] : memref<1x128x384xbf16, #tpu.memory_space<vmem>>, vector<1x128x384xbf16>
    %5 = vector.shape_cast %4 : vector<1x128x384xbf16> to vector<128x384xbf16>
    %cst = arith.constant dense<0.000000e+00> : vector<16x384xf32>
    %6 = tpu.matmul %3, %5, %cst {dimension_numbers = #tpu.dot_dimension_numbers<[1], [0], [0], [1], [0, 0, 1, 1], [], []>} : vector<16x128xbf16>, vector<128x384xbf16>, vector<16x384xf32> -> vector<16x384xf32>
    %c0_5 = arith.constant 0 : index
    %c0_6 = arith.constant 0 : index
    %7 = vector.load %arg4[%c0_5, %c0_6] : memref<1x384xf32, #tpu.memory_space<vmem>>, vector<1x384xf32>
    %8 = vector.broadcast %7 : vector<1x384xf32> to vector<16x384xf32>
    %9 = arith.addf %6, %8 : vector<16x384xf32>
    %cst_7 = arith.constant 0.000000e+00 : f32
    %10 = vector.broadcast %cst_7 : f32 to vector<16x384xf32>
    %11 = arith.maximumf %9, %10 : vector<16x384xf32>
    %c0_8 = arith.constant 0 : index
    %c0_9 = arith.constant 0 : index
    %12 = vector.load %arg7[%c0_8, %c0_9] : memref<16x384xf32, #tpu.memory_space<vmem>>, vector<16x384xf32>
    tpu.vector_store %arg7[%c0_8, %c0_9], %11 {strides = array<i32>} : memref<16x384xf32, #tpu.memory_space<vmem>>, vector<16x384xf32>,
    %c0_10 = arith.constant 0 : index
    %c0_11 = arith.constant 0 : index
    %13 = vector.load %arg8[%c0_10, %c0_11] : memref<16x128xf32, #tpu.memory_space<vmem>>, vector<16x128xf32>
    %14 = arith.truncf %11 : vector<16x384xf32> to vector<16x384xbf16>
    %c0_12 = arith.constant 0 : index
    %c0_13 = arith.constant 0 : index
    %15 = vector.load %arg5[%c0_12, %c0_13] : memref<384x128xbf16, #tpu.memory_space<vmem>>, vector<384x128xbf16>
    %cst_14 = arith.constant dense<0.000000e+00> : vector<16x128xf32>
    %16 = tpu.matmul %14, %15, %cst_14 {dimension_numbers = #tpu.dot_dimension_numbers<[1], [0], [0], [1], [0, 0, 1, 1], [], []>} : vector<16x384xbf16>, vector<384x128xbf16>, vector<16x128xf32> -> vector<16x128xf32>
    %17 = arith.addf %13, %16 : vector<16x128xf32>
    %c0_15 = arith.constant 0 : index
    %c0_16 = arith.constant 0 : index
    %18 = vector.load %arg8[%c0_15, %c0_16] : memref<16x128xf32, #tpu.memory_space<vmem>>, vector<16x128xf32>
    tpu.vector_store %arg8[%c0_15, %c0_16], %17 {strides = array<i32>} : memref<16x128xf32, #tpu.memory_space<vmem>>, vector<16x128xf32>,
    %c0_i32_17 = arith.constant 0 : i32
    %19 = arith.cmpi eq, %arg1, %c0_i32_17 : i32
    %20 = arith.extui %19 : i1 to i32
    %c0_i32_18 = arith.constant 0 : i32
    %21 = arith.cmpi ne, %20, %c0_i32_18 : i32
    scf.if %21 {
      %c0_19 = arith.constant 0 : index
      %c0_20 = arith.constant 0 : index
      %22 = vector.load %arg8[%c0_19, %c0_20] : memref<16x128xf32, #tpu.memory_space<vmem>>, vector<16x128xf32>
      %c0_21 = arith.constant 0 : index
      %c0_22 = arith.constant 0 : index
      %23 = vector.load %arg6[%c0_21, %c0_22] : memref<1x128xf32, #tpu.memory_space<vmem>>, vector<1x128xf32>
      %24 = vector.broadcast %23 : vector<1x128xf32> to vector<16x128xf32>
      %25 = arith.addf %22, %24 : vector<16x128xf32>
      %c0_23 = arith.constant 0 : index
      %c0_24 = arith.constant 0 : index
      %26 = vector.load %arg8[%c0_23, %c0_24] : memref<16x128xf32, #tpu.memory_space<vmem>>, vector<16x128xf32>
      tpu.vector_store %arg8[%c0_23, %c0_24], %25 {strides = array<i32>} : memref<16x128xf32, #tpu.memory_space<vmem>>, vector<16x128xf32>,
    } else {
    }
    return
  }
  func.func @transform_0(%arg0: i32, %arg1: i32) -> (i32, i32) {
    %c0_i32 = arith.constant 0 : i32
    %c0_i32_0 = arith.constant 0 : i32
    return %arg0, %c0_i32 : i32, i32
  }
  func.func @transform_1(%arg0: i32, %arg1: i32) -> (i32, i32, i32) {
    %c0_i32 = arith.constant 0 : i32
    %c0_i32_0 = arith.constant 0 : i32
    %c0_i32_1 = arith.constant 0 : i32
    return %arg1, %c0_i32, %c0_i32_0 : i32, i32, i32
  }
  func.func @transform_2(%arg0: i32, %arg1: i32) -> (i32, i32) {
    %c0_i32 = arith.constant 0 : i32
    %c0_i32_0 = arith.constant 0 : i32
    return %c0_i32, %arg1 : i32, i32
  }
  func.func @transform_3(%arg0: i32, %arg1: i32) -> (i32, i32) {
    %c0_i32 = arith.constant 0 : i32
    %c0_i32_0 = arith.constant 0 : i32
    return %arg1, %c0_i32 : i32, i32
  }
  func.func @transform_4(%arg0: i32, %arg1: i32) -> (i32, i32) {
    %c0_i32 = arith.constant 0 : i32
    %c0_i32_0 = arith.constant 0 : i32
    %c0_i32_1 = arith.constant 0 : i32
    return %c0_i32, %c0_i32_0 : i32, i32
  }
  func.func @transform_5(%arg0: i32, %arg1: i32) -> (i32, i32) {
    %c0_i32 = arith.constant 0 : i32
    return %arg0, %arg1 : i32, i32
  }
  func.func @transform_6(%arg0: i32, %arg1: i32) -> (i32, i32) {
    %c0_i32 = arith.constant 0 : i32
    %c0_i32_0 = arith.constant 0 : i32
    return %arg0, %c0_i32 : i32, i32
  }
}

</mosaic_0001>

<llo_original>
// kernel: _sae_forward.1
$region0: #{_sae_forward.1}
  #allocation0 [shape = 'u32[]', space=smem, size = 0x4, offset = 0x4, fixed_abs, tag = 'smem constant byte address 0x4 - core index']
  #allocation1 [shape = 'u32[144,128]{1,0:T(1,128)}', space=vmem, size = 0x12000, scoped, tag = 'internal scratch']
  %s0 = inlined_call_operand.vmem [shape: bf16[32,128], index: 0, kind: input, shape index: {}]
  %s1 = inlined_call_operand.hbm [shape: bf16[1,128,384], index: 1, kind: input, shape index: {}]
  %s2 = inlined_call_operand.vmem [shape: f32[1,384], index: 2, kind: input, shape index: {}]
  %s3 = inlined_call_operand.hbm [shape: bf16[384,128], index: 3, kind: input, shape index: {}]
  %s4 = inlined_call_operand.vmem [shape: f32[1,128], index: 4, kind: input, shape index: {}]
  %s5 = inlined_call_operand.vmem [shape: f32[32,384], index: 5, kind: output, shape index: {0}]
  %s6 = inlined_call_operand.vmem [shape: f32[32,128], index: 6, kind: output, shape index: {1}]
  %7 = xla_tuple %s5, %s6
  %s8 = sld [smem:[#allocation0]]
  $region77: #{_sae_forward.1} parent=0
    _
  %s10 = ssub.s32 1, %s8
  %s11 = scalar_select 0, %s10, %s8
  $region1: #{_sae_forward.1} parent=0
    #allocation2 [shape = 'u8[98304]{0}', space=vmem, size = 0x18000, scoped, tag = 'input window, operand 1, single buffered']
    #allocation3 [shape = 's32[2]{0}', space=sflag, size = 0x8, scoped, tag = 'scoped memory for _sae_forward.1']
    #allocation4 [shape = 'u8[98304]{0}', space=vmem, size = 0x18000, scoped, tag = 'input window, operand 3, single buffered']
    #allocation5 [shape = 's32[1]{0}', space=sflag, size = 0x4, scoped, tag = 'scoped memory for _sae_forward.1']
    %12 = vsyncpa [#allocation3], 0
    %13 = vsyncpa [#allocation5], 0
    loop: start=0, step=1, limit=4
    $region2: #{_sae_forward.1} parent=1 // loop_pre_header
      _
    $region3: #{_sae_forward.1} parent=1 // loop_header
      %s15 = sphi 0, %s19
      %p16 = scmp.ge.s32.totalorder %s15, 4
      %s22 = sphi 0, %s34
      %s23 = sphi 0, %s30
      %s24 = sphi 0, %s22
      %s25 = sphi 0, %s23
      %s26 = sphi 0, %s24
      %s27 = sphi 0, %s25
      %s37 = sphi 0, %s39
      %s40 = sphi 0, %s37
      %s41 = sphi 0, %s40
      %s57 = sphi 0, %s41
      %s63 = sphi 0, %s65
      %s66 = sphi 0, %s63
      %s67 = sphi 0, %s66
      %s83 = sphi 0, %s67
      %s89 = sphi 0, %s91
      %s92 = sphi 0, %s89
      %s93 = sphi 0, %s92
      %s109 = sphi 0, %s93
      %s115 = sphi 0, %s117
      %s118 = sphi 0, %s115
      %s119 = sphi 0, %s118
      %s135 = sphi 0, %s119
      %s139 = sphi 0, %s139
      %s141 = sphi 0, %s139
      %s142 = sphi 0, %s141
      %s156 = sphi 0, %s142
      %s164 = sphi 0, %s166
      %s167 = sphi 0, %s164
      %s168 = sphi 0, %s167
      %s184 = sphi 0, %s168
      %s190 = sphi 0, %s192
      %s193 = sphi 0, %s190
      %s194 = sphi 0, %s193
      %s210 = sphi 0, %s194
    $region4: #{_sae_forward.1} parent=1 // loop_header_branch
      %18 = sbr.rel (%p16) target = $region8
    $region5: #{_sae_forward.1} parent=1 // loop_body
      %s20 = ssub.s32 %s15, 1
      %s21 = ssub.s32 %s15, 2
      %s28 = sadd.s32 1, %s23
      %p29 = scmp.ge.s32.totalorder %s28, 1
      %s30 = scalar_select %p29, 0, %s28
      %s31 = sadd.s32 1, %s22
      %s32 = scalar_select %p29, %s31, %s22
      %p33 = scmp.ge.s32.totalorder %s32, 2
      %s34 = scalar_select %p33, 0, %s32
      %s35 = ssub.s32 %s22, %s34
      %p36 = scmp.eq.s32.totalorder %s35, 0
      %s38 = sadd.s32 %s37, 1
      %s39 = scalar_select %p36, %s37, %s38
      %p42 = pneg %p36
      %p43 = scmp.eq.s32.totalorder %s15, 1
      %p44 = por %p42, %p43
      %p45 = scmp.ne.s32.totalorder %s37, %s40
      %p46 = scmp.eq.s32.totalorder %s15, 0
      %p47 = por %p45, %p46
      %p48 = scmp.ne.s32.totalorder %s37, %s40
      %p49 = scmp.eq.s32.totalorder %s20, 1
      %p50 = por %p48, %p49
      %p51 = scmp.ne.s32.totalorder %s40, %s41
      %p52 = scmp.eq.s32.totalorder %s20, 0
      %p53 = por %p51, %p52
      %p54 = scmp.ne.s32.totalorder %s40, %s41
      %p55 = scmp.eq.s32.totalorder %s21, 1
      %p56 = por %p54, %p55
      %p58 = scmp.ne.s32.totalorder %s41, %s57
      %p59 = scmp.eq.s32.totalorder %s21, 0
      %p60 = por %p58, %p59
      %s61 = ssub.s32 %s23, %s30
      %p62 = scmp.eq.s32.totalorder %s61, 0
      %s64 = sadd.s32 %s63, 1
      %s65 = scalar_select %p62, %s63, %s64
      %p68 = pneg %p62
      %p69 = scmp.eq.s32.totalorder %s15, 1
      %p70 = por %p68, %p69
      %p71 = scmp.ne.s32.totalorder %s63, %s66
      %p72 = scmp.eq.s32.totalorder %s15, 0
      %p73 = por %p71, %p72
      %p74 = scmp.ne.s32.totalorder %s63, %s66
      %p75 = scmp.eq.s32.totalorder %s20, 1
      %p76 = por %p74, %p75
      %p77 = scmp.ne.s32.totalorder %s66, %s67
      %p78 = scmp.eq.s32.totalorder %s20, 0
      %p79 = por %p77, %p78
      %p80 = scmp.ne.s32.totalorder %s66, %s67
      %p81 = scmp.eq.s32.totalorder %s21, 1
      %p82 = por %p80, %p81
      %p84 = scmp.ne.s32.totalorder %s67, %s83
      %p85 = scmp.eq.s32.totalorder %s21, 0
      %p86 = por %p84, %p85
      %s87 = ssub.s32 %s23, %s30
      %p88 = scmp.eq.s32.totalorder %s87, 0
      %s90 = sadd.s32 %s89, 1
      %s91 = scalar_select %p88, %s89, %s90
      %p94 = pneg %p88
      %p95 = scmp.eq.s32.totalorder %s15, 1
      %p96 = por %p94, %p95
      %p97 = scmp.ne.s32.totalorder %s89, %s92
      %p98 = scmp.eq.s32.totalorder %s15, 0
      %p99 = por %p97, %p98
      %p100 = scmp.ne.s32.totalorder %s89, %s92
      %p101 = scmp.eq.s32.totalorder %s20, 1
      %p102 = por %p100, %p101
      %p103 = scmp.ne.s32.totalorder %s92, %s93
      %p104 = scmp.eq.s32.totalorder %s20, 0
      %p105 = por %p103, %p104
      %p106 = scmp.ne.s32.totalorder %s92, %s93
      %p107 = scmp.eq.s32.totalorder %s21, 1
      %p108 = por %p106, %p107
      %p110 = scmp.ne.s32.totalorder %s93, %s109
      %p111 = scmp.eq.s32.totalorder %s21, 0
      %p112 = por %p110, %p111
      %s113 = ssub.s32 %s23, %s30
      %p114 = scmp.eq.s32.totalorder %s113, 0
      %s116 = sadd.s32 %s115, 1
      %s117 = scalar_select %p114, %s115, %s116
      %p120 = pneg %p114
      %p121 = scmp.eq.s32.totalorder %s15, 1
      %p122 = por %p120, %p121
      %p123 = scmp.ne.s32.totalorder %s115, %s118
      %p124 = scmp.eq.s32.totalorder %s15, 0
      %p125 = por %p123, %p124
      %p126 = scmp.ne.s32.totalorder %s115, %s118
      %p127 = scmp.eq.s32.totalorder %s20, 1
      %p128 = por %p126, %p127
      %p129 = scmp.ne.s32.totalorder %s118, %s119
      %p130 = scmp.eq.s32.totalorder %s20, 0
      %p131 = por %p129, %p130
      %p132 = scmp.ne.s32.totalorder %s118, %s119
      %p133 = scmp.eq.s32.totalorder %s21, 1
      %p134 = por %p132, %p133
      %p136 = scmp.ne.s32.totalorder %s119, %s135
      %p137 = scmp.eq.s32.totalorder %s21, 0
      %p138 = por %p136, %p137
      %s140 = sadd.s32 %s139, 1
      %p143 = scmp.eq.s32.totalorder %s15, 1
      %p144 = scmp.ne.s32.totalorder %s139, %s141
      %p145 = scmp.eq.s32.totalorder %s15, 0
      %p146 = por %p144, %p145
      %p147 = scmp.ne.s32.totalorder %s139, %s141
      %p148 = scmp.eq.s32.totalorder %s20, 1
      %p149 = por %p147, %p148
      %p150 = scmp.ne.s32.totalorder %s141, %s142
      %p151 = scmp.eq.s32.totalorder %s20, 0
      %p152 = por %p150, %p151
      %p153 = scmp.ne.s32.totalorder %s141, %s142
      %p154 = scmp.eq.s32.totalorder %s21, 1
      %p155 = por %p153, %p154
      %p157 = scmp.ne.s32.totalorder %s142, %s156
      %p158 = scmp.eq.s32.totalorder %s21, 0
      %p159 = por %p157, %p158
      %s160 = ssub.s32 %s22, %s34
      %s161 = ssub.s32 %s23, %s30
      %s162 = sor.u32 %s160, %s161
      %p163 = scmp.eq.s32.totalorder %s162, 0
      %s165 = sadd.s32 %s164, 1
      %s166 = scalar_select %p163, %s164, %s165
      %p169 = pneg %p163
      %p170 = scmp.eq.s32.totalorder %s15, 1
      %p171 = por %p169, %p170
      %p172 = scmp.ne.s32.totalorder %s164, %s167
      %p173 = scmp.eq.s32.totalorder %s15, 0
      %p174 = por %p172, %p173
      %p175 = scmp.ne.s32.totalorder %s164, %s167
      %p176 = scmp.eq.s32.totalorder %s20, 1
      %p177 = por %p175, %p176
      %p178 = scmp.ne.s32.totalorder %s167, %s168
      %p179 = scmp.eq.s32.totalorder %s20, 0
      %p180 = por %p178, %p179
      %p181 = scmp.ne.s32.totalorder %s167, %s168
      %p182 = scmp.eq.s32.totalorder %s21, 1
      %p183 = por %p181, %p182
      %p185 = scmp.ne.s32.totalorder %s168, %s184
      %p186 = scmp.eq.s32.totalorder %s21, 0
      %p187 = por %p185, %p186
      %s188 = ssub.s32 %s22, %s34
      %p189 = scmp.eq.s32.totalorder %s188, 0
      %s191 = sadd.s32 %s190, 1
      %s192 = scalar_select %p189, %s190, %s191
      %p195 = pneg %p189
      %p196 = scmp.eq.s32.totalorder %s15, 1
      %p197 = por %p195, %p196
      %p198 = scmp.ne.s32.totalorder %s190, %s193
      %p199 = scmp.eq.s32.totalorder %s15, 0
      %p200 = por %p198, %p199
      %p201 = scmp.ne.s32.totalorder %s190, %s193
      %p202 = scmp.eq.s32.totalorder %s20, 1
      %p203 = por %p201, %p202
      %p204 = scmp.ne.s32.totalorder %s193, %s194
      %p205 = scmp.eq.s32.totalorder %s20, 0
      %p206 = por %p204, %p205
      %p207 = scmp.ne.s32.totalorder %s193, %s194
      %p208 = scmp.eq.s32.totalorder %s21, 1
      %p209 = por %p207, %p208
      %p211 = scmp.ne.s32.totalorder %s194, %s210
      %p212 = scmp.eq.s32.totalorder %s21, 0
      %p213 = por %p211, %p212
      %p214 = scmp.le.s32.totalorder 1, %s15
      %p215 = scmp.lt.s32.totalorder %s15, 3
      %p216 = pnand %p214, %p215
      %p217 = pneg %p216
      // Predicated region
      $region9: #{_sae_forward.1} parent=5 // pred_check
        _
      $region10: #{_sae_forward.1} parent=5 // pred_check_branch
        %219 = sbr.rel (%p216) target = $region12
      $region11: #{_sae_forward.1} parent=5 // pred_region
        %s220 = ssub.s32 %s15, 1
        // Predicated region
        $region13: #{_sae_forward.1} parent=11 // pred_check
          %p221 = pneg %p79
        $region14: #{_sae_forward.1} parent=11 // pred_check_branch
          %223 = sbr.rel (%p221) target = $region16
        $region15: #{_sae_forward.1} parent=11 // pred_region
          %s225 = ssub.s32 3072, 3072
          %226 = vsyncadd [#allocation3], %s225
          %s227 = smul.addr %s25, 48
          %s228 = smul.addr %s227, 64
          %s229 = scalar_lea.hbm %s1, %s228
          %s230 = sshll.u32 [#allocation2], 4
          %s231 = int_to_ptr.vmem [resolvable:$true] %s230
          %236 = dma.hbm_to_vmem [thread:$0]  %s229, 3072, %s231, [#allocation3], 192, 192, 12
        $region16: #{_sae_forward.1} parent=11 // pred_fallthru
          _
        // Predicated region
        $region17: #{_sae_forward.1} parent=11 // pred_check
          %p237 = pneg %p105
        $region18: #{_sae_forward.1} parent=11 // pred_check_branch
          %239 = sbr.rel (%p237) target = $region20
        $region19: #{_sae_forward.1} parent=11 // pred_region
          %s240 = smul.u32 3, %s25
          %p241 = scmp.lt.s32.totalorder %s240, 2
          %s242 = scalar_select %p241, %s240, 2
          %s243 = scalar_lea.vmem %s2, %s242
          %s244 = smul.u32 3, %s25
        $region20: #{_sae_forward.1} parent=11 // pred_fallthru
          _
        // Predicated region
        $region21: #{_sae_forward.1} parent=11 // pred_check
          %p245 = pneg %p131
        $region22: #{_sae_forward.1} parent=11 // pred_check_branch
          %247 = sbr.rel (%p245) target = $region24
        $region23: #{_sae_forward.1} parent=11 // pred_region
          %s248 = smul.u32 48, %s25
          %s250 = ssub.s32 3072, 3072
          %251 = vsyncadd [#allocation5], %s250
          %s252 = smul.addr %s248, 64
          %s253 = scalar_lea.hbm %s3, %s252
          %s254 = sshll.u32 [#allocation4], 4
          %s255 = int_to_ptr.vmem [resolvable:$true] %s254
          %260 = dma.hbm_to_vmem [thread:$0]  %s253, 3072, %s255, [#allocation5], 64, 64, 4
        $region24: #{_sae_forward.1} parent=11 // pred_fallthru
          _
        // Predicated region
        $region25: #{_sae_forward.1} parent=11 // pred_check
          %p261 = pneg %p152
        $region26: #{_sae_forward.1} parent=11 // pred_check_branch
          %263 = sbr.rel (%p261) target = $region28
        $region27: #{_sae_forward.1} parent=11 // pred_region
          _
        $region28: #{_sae_forward.1} parent=11 // pred_fallthru
          _
      $region12: #{_sae_forward.1} parent=5 // pred_fallthru
        _
      %p264 = scmp.lt.s32.totalorder %s15, 2
      // Predicated region
      $region29: #{_sae_forward.1} parent=5 // pred_check
        %p265 = pneg %p264
      $region30: #{_sae_forward.1} parent=5 // pred_check_branch
        %267 = sbr.rel (%p265) target = $region32
      $region31: #{_sae_forward.1} parent=5 // pred_region
        // Predicated region
        $region33: #{_sae_forward.1} parent=31 // pred_check
          %p268 = pneg %p47
        $region34: #{_sae_forward.1} parent=31 // pred_check_branch
          %270 = sbr.rel (%p268) target = $region36
        $region35: #{_sae_forward.1} parent=31 // pred_region
          %s271 = smul.u32 2, %s22
          %p272 = scmp.lt.s32.totalorder %s271, 3
          %s273 = scalar_select %p272, %s271, 3
          %s274 = smul.addr %s273, 4
          %s275 = scalar_lea.vmem %s0, %s274
          %s276 = smul.u32 2, %s22
        $region36: #{_sae_forward.1} parent=31 // pred_fallthru
          _
      $region32: #{_sae_forward.1} parent=5 // pred_fallthru
        _
      %p277 = scmp.le.s32.totalorder 1, %s15
      %p278 = scmp.lt.s32.totalorder %s15, 3
      %p279 = pnand %p277, %p278
      %p280 = pneg %p279
      // Predicated region
      $region37: #{_sae_forward.1} parent=5 // pred_check
        _
      $region38: #{_sae_forward.1} parent=5 // pred_check_branch
        %282 = sbr.rel (%p279) target = $region40
      $region39: #{_sae_forward.1} parent=5 // pred_region
        %s283 = ssub.s32 %s15, 1
        // Predicated region
        $region41: #{_sae_forward.1} parent=39 // pred_check
          %p284 = pneg %p79
        $region42: #{_sae_forward.1} parent=39 // pred_check_branch
          %286 = sbr.rel (%p284) target = $region44
        $region43: #{_sae_forward.1} parent=39 // pred_region
          %287 = dma.done [#allocation3], 3072
        $region44: #{_sae_forward.1} parent=39 // pred_fallthru
          _
        // Predicated region
        $region45: #{_sae_forward.1} parent=39 // pred_check
          %p288 = pneg %p131
        $region46: #{_sae_forward.1} parent=39 // pred_check_branch
          %290 = sbr.rel (%p288) target = $region48
        $region47: #{_sae_forward.1} parent=39 // pred_region
          %291 = dma.done [#allocation5], 3072
        $region48: #{_sae_forward.1} parent=39 // pred_fallthru
          _
        %s292 = smul.u32 2, %s24
        %p293 = scmp.lt.s32.totalorder %s292, 3
        %s294 = scalar_select %p293, %s292, 3
        %s295 = smul.addr %s294, 4
        %s296 = scalar_lea.vmem %s0, %s295
        %p297 = pneg %p53
        %p298 = pneg %p50
        %p299 = pneg %p79
        %p300 = pneg %p76
        %s301 = smul.u32 3, %s25
        %p302 = scmp.lt.s32.totalorder %s301, 2
        %s303 = scalar_select %p302, %s301, 2
        %s304 = scalar_lea.vmem %s2, %s303
        %p305 = pneg %p105
        %p306 = pneg %p102
        %p307 = pneg %p131
        %p308 = pneg %p128
        %p309 = pneg %p152
        %p310 = pneg %p149
        %p311 = pneg %p180
        %p312 = pneg %p177
        %s313 = smul.u32 2, %s24
        %s314 = smul.u32 3, %s25
        %p315 = scmp.lt.s32.totalorder %s313, 3
        %s316 = scalar_select %p315, %s313, 3
        %p317 = scmp.lt.s32.totalorder %s314, 2
        %s318 = scalar_select %p317, %s314, 2
        %s319 = smul.addr %s316, 3
        %s320 = sadd.s32 %s318, %s319
        %s321 = smul.addr %s320, 8
        %s322 = scalar_lea.vmem %s5, %s321
        %p323 = pneg %p206
        %p324 = pneg %p203
        %s325 = smul.u32 2, %s24
        %p326 = scmp.lt.s32.totalorder %s325, 3
        %s327 = scalar_select %p326, %s325, 3
        %s328 = smul.addr %s327, 8
        %s329 = scalar_lea.vmem %s6, %s328
        %s330 = smul.u32 2, %s24
        %p331 = scmp.lt.s32.totalorder %s330, 3
        %s332 = scalar_select %p331, %s330, 3
        %s333 = smul.addr %s332, 4
        %s334 = scalar_lea.vmem %s0, %s333
        %s335 = smul.u32 2, %s24
        %s336 = smul.u32 3, %s25
        %p337 = scmp.lt.s32.totalorder %s336, 2
        %s338 = scalar_select %p337, %s336, 2
        %s339 = scalar_lea.vmem %s2, %s338
        %s340 = smul.u32 3, %s25
        %s341 = smul.u32 48, %s25
        %s342 = smul.u32 2, %s24
        %s343 = smul.u32 3, %s25
        %p344 = scmp.lt.s32.totalorder %s342, 3
        %s345 = scalar_select %p344, %s342, 3
        %p346 = scmp.lt.s32.totalorder %s343, 2
        %s347 = scalar_select %p346, %s343, 2
        %s348 = smul.addr %s345, 3
        %s349 = sadd.s32 %s347, %s348
        %s350 = smul.addr %s349, 8
        %s351 = scalar_lea.vmem %s5, %s350
        %s352 = smul.u32 2, %s24
        %s353 = smul.u32 3, %s25
        %s354 = smul.u32 2, %s24
        %p355 = scmp.lt.s32.totalorder %s354, 3
        %s356 = scalar_select %p355, %s354, 3
        %s357 = smul.addr %s356, 8
        %s358 = scalar_lea.vmem %s6, %s357
        %s359 = smul.u32 2, %s24
        %p361 = scmp.eq.s32.totalorder %s25, 0
        // Predicated region
        $region49: #{_sae_forward.1} parent=39 // pred_check
          %p362 = pneg %p361
        $region50: #{_sae_forward.1} parent=39 // pred_check_branch
          %364 = sbr.rel (%p362) target = $region52
        $region51: #{_sae_forward.1} parent=39 // pred_region
          %365 = vst [vmem:[%s358] sm:$0xff] 0.0
          %366 = vst [vmem:[%s358 + $0x8] sm:$0xff] 0.0
        $region52: #{_sae_forward.1} parent=39 // pred_fallthru
          _
        %v367 = vld [vmem:[%s334] sm:$0xf]
        %v368 = vld [vmem:[%s334 + $0x4] sm:$0xf]
        %v369 = vld [vmem:[#allocation2] sm:$0xff]
        %v370 = vld [vmem:[#allocation2 + $0x8] sm:$0xf]
        %v371 = vld [vmem:[#allocation2 + $0xc] sm:$0xff]
        %v372 = vld [vmem:[#allocation2 + $0x14] sm:$0xf]
        %v373 = vld [vmem:[#allocation2 + $0x18] sm:$0xff]
        %v374 = vld [vmem:[#allocation2 + $0x20] sm:$0xf]
        %v375 = vld [vmem:[#allocation2 + $0x24] sm:$0xff]
        %v376 = vld [vmem:[#allocation2 + $0x2c] sm:$0xf]
        %v377 = vld [vmem:[#allocation2 + $0x30] sm:$0xff]
        %v378 = vld [vmem:[#allocation2 + $0x38] sm:$0xf]
        %v379 = vld [vmem:[#allocation2 + $0x3c] sm:$0xff]
        %v380 = vld [vmem:[#allocation2 + $0x44] sm:$0xf]
        %v381 = vld [vmem:[#allocation2 + $0x48] sm:$0xff]
        %v382 = vld [vmem:[#allocation2 + $0x50] sm:$0xf]
        %v383 = vld [vmem:[#allocation2 + $0x54] sm:$0xff]
        %v384 = vld [vmem:[#allocation2 + $0x5c] sm:$0xf]
        %v385 = vld [vmem:[#allocation2 + $0x60] sm:$0xff]
        %v386 = vld [vmem:[#allocation2 + $0x68] sm:$0xf]
        %v387 = vld [vmem:[#allocation2 + $0x6c] sm:$0xff]
        %v388 = vld [vmem:[#allocation2 + $0x74] sm:$0xf]
        %v389 = vld [vmem:[#allocation2 + $0x78] sm:$0xff]
        %v390 = vld [vmem:[#allocation2 + $0x80] sm:$0xf]
        %v391 = vld [vmem:[#allocation2 + $0x84] sm:$0xff]
        %v392 = vld [vmem:[#allocation2 + $0x8c] sm:$0xf]
        %v393 = vld [vmem:[#allocation2 + $0x90] sm:$0xff]
        %v394 = vld [vmem:[#allocation2 + $0x98] sm:$0xf]
        %v395 = vld [vmem:[#allocation2 + $0x9c] sm:$0xff]
        %v396 = vld [vmem:[#allocation2 + $0xa4] sm:$0xf]
        %v397 = vld [vmem:[#allocation2 + $0xa8] sm:$0xff]
        %v398 = vld [vmem:[#allocation2 + $0xb0] sm:$0xf]
        %v399 = vld [vmem:[#allocation2 + $0xb4] sm:$0xff]
        %v400 = vld [vmem:[#allocation2 + $0xbc] sm:$0xf]
        %v401 = vld [vmem:[%s339] sm:$0x7]
        %v403 = vlaneseq
        %v404 = vshrl.u32 %v403, 7
        %v405 = vsub.s32 0, %v404
        %v406 = vrot.slane %v401, %v405
        %v407 = vlaneseq
        %v408 = vshrl.u32 %v407, 7
        %v409 = vsub.s32 1, %v408
        %v410 = vrot.slane %v401, %v409
        %v411 = vlaneseq
        %v412 = vshrl.u32 %v411, 7
        %v413 = vsub.s32 2, %v412
        %v414 = vrot.slane %v401, %v413
        %v420 = vunpack.c.l.b16 %v367
        %v421 = vunpack.c.l.b16 %v368
        %v422 = vpack.c.b16 %v421, %v420
        %v456 = vunpack.c.l.b16 %v369
        %v457 = vunpack.c.h.b16 %v369
        %v458 = vunpack.c.l.b16 %v370
        %v459 = vunpack.c.l.b16 %v371
        %v460 = vunpack.c.h.b16 %v371
        %v461 = vunpack.c.l.b16 %v372
        %v462 = vunpack.c.l.b16 %v373
        %v463 = vunpack.c.h.b16 %v373
        %v464 = vunpack.c.l.b16 %v374
        %v465 = vunpack.c.l.b16 %v375
        %v466 = vunpack.c.h.b16 %v375
        %v467 = vunpack.c.l.b16 %v376
        %v468 = vunpack.c.l.b16 %v377
        %v469 = vunpack.c.h.b16 %v377
        %v470 = vunpack.c.l.b16 %v378
        %v471 = vunpack.c.l.b16 %v379
        %v472 = vunpack.c.h.b16 %v379
        %v473 = vunpack.c.l.b16 %v380
        %v474 = vunpack.c.l.b16 %v381
        %v475 = vunpack.c.h.b16 %v381
        %v476 = vunpack.c.l.b16 %v382
        %v477 = vunpack.c.l.b16 %v383
        %v478 = vunpack.c.h.b16 %v383
        %v479 = vunpack.c.l.b16 %v384
        %v480 = vunpack.c.l.b16 %v385
        %v481 = vunpack.c.h.b16 %v385
        %v482 = vunpack.c.l.b16 %v386
        %v483 = vunpack.c.l.b16 %v387
        %v484 = vunpack.c.h.b16 %v387
        %v485 = vunpack.c.l.b16 %v388
        %v486 = vunpack.c.l.b16 %v389
        %v487 = vunpack.c.h.b16 %v389
        %v488 = vunpack.c.l.b16 %v390
        %v489 = vunpack.c.l.b16 %v391
        %v490 = vunpack.c.h.b16 %v391
        %v491 = vunpack.c.l.b16 %v392
        %v492 = vunpack.c.l.b16 %v393
        %v493 = vunpack.c.h.b16 %v393
        %v494 = vunpack.c.l.b16 %v394
        %v495 = vunpack.c.l.b16 %v395
        %v496 = vunpack.c.h.b16 %v395
        %v497 = vunpack.c.l.b16 %v396
        %v498 = vunpack.c.l.b16 %v397
        %v499 = vunpack.c.h.b16 %v397
        %v500 = vunpack.c.l.b16 %v398
        %v501 = vunpack.c.l.b16 %v399
        %v502 = vunpack.c.h.b16 %v399
        %v503 = vunpack.c.l.b16 %v400
        %v504 = vpack.c.b16 %v459, %v456
        %v505 = vpack.c.b16 %v460, %v457
        %v506 = vpack.c.b16 %v461, %v458
        %v507 = vpack.c.b16 %v465, %v462
        %v508 = vpack.c.b16 %v466, %v463
        %v509 = vpack.c.b16 %v467, %v464
        %v510 = vpack.c.b16 %v471, %v468
        %v511 = vpack.c.b16 %v472, %v469
        %v512 = vpack.c.b16 %v473, %v470
        %v513 = vpack.c.b16 %v477, %v474
        %v514 = vpack.c.b16 %v478, %v475
        %v515 = vpack.c.b16 %v479, %v476
        %v516 = vpack.c.b16 %v483, %v480
        %v517 = vpack.c.b16 %v484, %v481
        %v518 = vpack.c.b16 %v485, %v482
        %v519 = vpack.c.b16 %v489, %v486
        %v520 = vpack.c.b16 %v490, %v487
        %v521 = vpack.c.b16 %v491, %v488
        %v522 = vpack.c.b16 %v495, %v492
        %v523 = vpack.c.b16 %v496, %v493
        %v524 = vpack.c.b16 %v497, %v494
        %v525 = vpack.c.b16 %v501, %v498
        %v526 = vpack.c.b16 %v502, %v499
        %v527 = vpack.c.b16 %v503, %v500
        %552 = vmatprep.subr.bf16.mxu0 %v505
        %553 = vmatpush1.bf16.msra.mxu0 %v504
        %554 = vmatprep.subr.bf16.mxu0 %v508
        %555 = vmatpush1.bf16.msra.mxu0 %v507
        %556 = vmatprep.subr.bf16.mxu0 %v511
        %557 = vmatpush1.bf16.msra.mxu0 %v510
        %558 = vmatprep.subr.bf16.mxu0 %v514
        %559 = vmatpush1.bf16.msra.mxu0 %v513
        %560 = vmatprep.subr.bf16.mxu0 %v517
        %561 = vmatpush1.bf16.msra.mxu0 %v516
        %562 = vmatprep.subr.bf16.mxu0 %v520
        %563 = vmatpush1.bf16.msra.mxu0 %v519
        %564 = vmatprep.subr.bf16.mxu0 %v523
        %565 = vmatpush1.bf16.msra.mxu0 %v522
        %566 = vmatprep.subr.bf16.mxu0 %v526
        %567 = vmatpush1.bf16.msra.mxu0 %v525
        %568 = vmatprep.subr.bf16.mxu0 0
        %569 = vmatpush1.bf16.msra.mxu0 0
        %570 = vmatprep.subr.bf16.mxu0 0
        %571 = vmatpush1.bf16.msra.mxu0 0
        %572 = vmatprep.subr.bf16.mxu0 0
        %573 = vmatpush1.bf16.msra.mxu0 0
        %574 = vmatprep.subr.bf16.mxu0 0
        %575 = vmatpush1.bf16.msra.mxu0 0
        %576 = vmatprep.subr.bf16.mxu0 0
        %577 = vmatpush1.bf16.msra.mxu0 0
        %578 = vmatprep.subr.bf16.mxu0 0
        %579 = vmatpush1.bf16.msra.mxu0 0
        %580 = vmatprep.subr.bf16.mxu0 0
        %581 = vmatpush1.bf16.msra.mxu0 0
        %582 = vmatprep.subr.bf16.mxu0 0
        %583 = vmatpush1.bf16.msra.mxu0 0
        %584 = vmatprep.mubr.bf16.mxu0 0
        %585 = vmatmul.mubr.bf16.gmra.mrb[0].mxu0 %v422
        %v586 = vpop.f32.mrb[0].mxu0
        %v587 = vadd.f32 %v406, %v586
        %v588 = vpop.f32.mrb[0].mxu0
        %v589 = vadd.f32 %v410, %v588
        %v590 = vpop.f32.mrb[0].mxu0
        %v591 = vadd.f32 %v406, %v590
        %v592 = vpop.f32.mrb[0].mxu0
        %v593 = vadd.f32 %v410, %v592
        %594 = vdwg.mxu0
        %595 = vmatprep.subr.bf16.mxu0 0
        %596 = vmatpush1.bf16.msra.mxu0 %v506
        %597 = vmatprep.subr.bf16.mxu0 0
        %598 = vmatpush1.bf16.msra.mxu0 %v509
        %599 = vmatprep.subr.bf16.mxu0 0
        %600 = vmatpush1.bf16.msra.mxu0 %v512
        %601 = vmatprep.subr.bf16.mxu0 0
        %602 = vmatpush1.bf16.msra.mxu0 %v515
        %603 = vmatprep.subr.bf16.mxu0 0
        %604 = vmatpush1.bf16.msra.mxu0 %v518
        %605 = vmatprep.subr.bf16.mxu0 0
        %606 = vmatpush1.bf16.msra.mxu0 %v521
        %607 = vmatprep.subr.bf16.mxu0 0
        %608 = vmatpush1.bf16.msra.mxu0 %v524
        %609 = vmatprep.subr.bf16.mxu0 0
        %610 = vmatpush1.bf16.msra.mxu0 %v527
        %611 = vmatprep.subr.bf16.mxu0 0
        %612 = vmatpush1.bf16.msra.mxu0 0
        %613 = vmatprep.subr.bf16.mxu0 0
        %614 = vmatpush1.bf16.msra.mxu0 0
        %615 = vmatprep.subr.bf16.mxu0 0
        %616 = vmatpush1.bf16.msra.mxu0 0
        %617 = vmatprep.subr.bf16.mxu0 0
        %618 = vmatpush1.bf16.msra.mxu0 0
        %619 = vmatprep.subr.bf16.mxu0 0
        %620 = vmatpush1.bf16.msra.mxu0 0
        %621 = vmatprep.subr.bf16.mxu0 0
        %622 = vmatpush1.bf16.msra.mxu0 0
        %623 = vmatprep.subr.bf16.mxu0 0
        %624 = vmatpush1.bf16.msra.mxu0 0
        %625 = vmatprep.subr.bf16.mxu0 0
        %626 = vmatpush1.bf16.msra.mxu0 0
        %627 = vmatprep.mubr.bf16.mxu0 0
        %628 = vmatmul.mubr.bf16.gmra.mrb[0].mxu0 %v422
        %v629 = vpop.f32.mrb[0].mxu0
        %v630 = vadd.f32 %v414, %v629
        %v631 = vpop.f32.mrb[0].mxu0
        %v632 = vpop.f32.mrb[0].mxu0
        %v633 = vadd.f32 %v414, %v632
        %v634 = vpop.f32.mrb[0].mxu0
        %635 = vdwg.mxu0
        %v636 = vmax.f32 %v587, 0.0
        %v637 = vmax.f32 %v589, 0.0
        %v638 = vmax.f32 %v630, 0.0
        %v639 = vmax.f32 %v591, 0.0
        %v640 = vmax.f32 %v593, 0.0
        %v641 = vmax.f32 %v633, 0.0
        %642 = vst [vmem:[%s351] sm:$0xff] %v636
        %643 = vst [vmem:[%s351 + $0x8] sm:$0xff] %v637
        %644 = vst [vmem:[%s351 + $0x10] sm:$0xff] %v638
        %645 = vst [vmem:[%s351 + $0x18] sm:$0xff] %v639
        %646 = vst [vmem:[%s351 + $0x20] sm:$0xff] %v640
        %647 = vst [vmem:[%s351 + $0x28] sm:$0xff] %v641
        %v648 = vld [vmem:[%s358] sm:$0xff]
        %v649 = vld [vmem:[%s358 + $0x8] sm:$0xff]
        %v650 = vpack.c.bf16 %v639, %v636
        %v651 = vpack.c.bf16 %v640, %v637
        %v652 = vpack.c.bf16 %v641, %v638
        %v653 = vld [vmem:[#allocation4] sm:$0xf]
        %v654 = vld [vmem:[#allocation4 + $0x4] sm:$0xf]
        %v655 = vld [vmem:[#allocation4 + $0x8] sm:$0xf]
        %v656 = vld [vmem:[#allocation4 + $0xc] sm:$0xf]
        %v657 = vld [vmem:[#allocation4 + $0x10] sm:$0xf]
        %v658 = vld [vmem:[#allocation4 + $0x14] sm:$0xf]
        %v659 = vld [vmem:[#allocation4 + $0x18] sm:$0xf]
        %v660 = vld [vmem:[#allocation4 + $0x1c] sm:$0xf]
        %v661 = vld [vmem:[#allocation4 + $0x20] sm:$0xf]
        %v662 = vld [vmem:[#allocation4 + $0x24] sm:$0xf]
        %v663 = vld [vmem:[#allocation4 + $0x28] sm:$0xf]
        %v664 = vld [vmem:[#allocation4 + $0x2c] sm:$0xf]
        %v665 = vld [vmem:[#allocation4 + $0x30] sm:$0xf]
        %v666 = vld [vmem:[#allocation4 + $0x34] sm:$0xf]
        %v667 = vld [vmem:[#allocation4 + $0x38] sm:$0xf]
        %v668 = vld [vmem:[#allocation4 + $0x3c] sm:$0xf]
        %v669 = vld [vmem:[#allocation4 + $0x40] sm:$0xf]
        %v670 = vld [vmem:[#allocation4 + $0x44] sm:$0xf]
        %v671 = vld [vmem:[#allocation4 + $0x48] sm:$0xf]
        %v672 = vld [vmem:[#allocation4 + $0x4c] sm:$0xf]
        %v673 = vld [vmem:[#allocation4 + $0x50] sm:$0xf]
        %v674 = vld [vmem:[#allocation4 + $0x54] sm:$0xf]
        %v675 = vld [vmem:[#allocation4 + $0x58] sm:$0xf]
        %v676 = vld [vmem:[#allocation4 + $0x5c] sm:$0xf]
        %v677 = vld [vmem:[#allocation4 + $0x60] sm:$0xf]
        %v678 = vld [vmem:[#allocation4 + $0x64] sm:$0xf]
        %v679 = vld [vmem:[#allocation4 + $0x68] sm:$0xf]
        %v680 = vld [vmem:[#allocation4 + $0x6c] sm:$0xf]
        %v681 = vld [vmem:[#allocation4 + $0x70] sm:$0xf]
        %v682 = vld [vmem:[#allocation4 + $0x74] sm:$0xf]
        %v683 = vld [vmem:[#allocation4 + $0x78] sm:$0xf]
        %v684 = vld [vmem:[#allocation4 + $0x7c] sm:$0xf]
        %v685 = vld [vmem:[#allocation4 + $0x80] sm:$0xf]
        %v686 = vld [vmem:[#allocation4 + $0x84] sm:$0xf]
        %v687 = vld [vmem:[#allocation4 + $0x88] sm:$0xf]
        %v688 = vld [vmem:[#allocation4 + $0x8c] sm:$0xf]
        %v689 = vld [vmem:[#allocation4 + $0x90] sm:$0xf]
        %v690 = vld [vmem:[#allocation4 + $0x94] sm:$0xf]
        %v691 = vld [vmem:[#allocation4 + $0x98] sm:$0xf]
        %v692 = vld [vmem:[#allocation4 + $0x9c] sm:$0xf]
        %v693 = vld [vmem:[#allocation4 + $0xa0] sm:$0xf]
        %v694 = vld [vmem:[#allocation4 + $0xa4] sm:$0xf]
        %v695 = vld [vmem:[#allocation4 + $0xa8] sm:$0xf]
        %v696 = vld [vmem:[#allocation4 + $0xac] sm:$0xf]
        %v697 = vld [vmem:[#allocation4 + $0xb0] sm:$0xf]
        %v698 = vld [vmem:[#allocation4 + $0xb4] sm:$0xf]
        %v699 = vld [vmem:[#allocation4 + $0xb8] sm:$0xf]
        %v700 = vld [vmem:[#allocation4 + $0xbc] sm:$0xf]
        %v749 = vunpack.c.l.b16 %v653
        %v750 = vunpack.c.l.b16 %v654
        %v751 = vunpack.c.l.b16 %v655
        %v752 = vunpack.c.l.b16 %v656
        %v753 = vunpack.c.l.b16 %v657
        %v754 = vunpack.c.l.b16 %v658
        %v755 = vunpack.c.l.b16 %v659
        %v756 = vunpack.c.l.b16 %v660
        %v757 = vunpack.c.l.b16 %v661
        %v758 = vunpack.c.l.b16 %v662
        %v759 = vunpack.c.l.b16 %v663
        %v760 = vunpack.c.l.b16 %v664
        %v761 = vunpack.c.l.b16 %v665
        %v762 = vunpack.c.l.b16 %v666
        %v763 = vunpack.c.l.b16 %v667
        %v764 = vunpack.c.l.b16 %v668
        %v765 = vunpack.c.l.b16 %v669
        %v766 = vunpack.c.l.b16 %v670
        %v767 = vunpack.c.l.b16 %v671
        %v768 = vunpack.c.l.b16 %v672
        %v769 = vunpack.c.l.b16 %v673
        %v770 = vunpack.c.l.b16 %v674
        %v771 = vunpack.c.l.b16 %v675
        %v772 = vunpack.c.l.b16 %v676
        %v773 = vunpack.c.l.b16 %v677
        %v774 = vunpack.c.l.b16 %v678
        %v775 = vunpack.c.l.b16 %v679
        %v776 = vunpack.c.l.b16 %v680
        %v777 = vunpack.c.l.b16 %v681
        %v778 = vunpack.c.l.b16 %v682
        %v779 = vunpack.c.l.b16 %v683
        %v780 = vunpack.c.l.b16 %v684
        %v781 = vunpack.c.l.b16 %v685
        %v782 = vunpack.c.l.b16 %v686
        %v783 = vunpack.c.l.b16 %v687
        %v784 = vunpack.c.l.b16 %v688
        %v785 = vunpack.c.l.b16 %v689
        %v786 = vunpack.c.l.b16 %v690
        %v787 = vunpack.c.l.b16 %v691
        %v788 = vunpack.c.l.b16 %v692
        %v789 = vunpack.c.l.b16 %v693
        %v790 = vunpack.c.l.b16 %v694
        %v791 = vunpack.c.l.b16 %v695
        %v792 = vunpack.c.l.b16 %v696
        %v793 = vunpack.c.l.b16 %v697
        %v794 = vunpack.c.l.b16 %v698
        %v795 = vunpack.c.l.b16 %v699
        %v796 = vunpack.c.l.b16 %v700
        %v797 = vpack.c.b16 %v750, %v749
        %v798 = vpack.c.b16 %v752, %v751
        %v799 = vpack.c.b16 %v754, %v753
        %v800 = vpack.c.b16 %v756, %v755
        %v801 = vpack.c.b16 %v758, %v757
        %v802 = vpack.c.b16 %v760, %v759
        %v803 = vpack.c.b16 %v762, %v761
        %v804 = vpack.c.b16 %v764, %v763
        %v805 = vpack.c.b16 %v766, %v765
        %v806 = vpack.c.b16 %v768, %v767
        %v807 = vpack.c.b16 %v770, %v769
        %v808 = vpack.c.b16 %v772, %v771
        %v809 = vpack.c.b16 %v774, %v773
        %v810 = vpack.c.b16 %v776, %v775
        %v811 = vpack.c.b16 %v778, %v777
        %v812 = vpack.c.b16 %v780, %v779
        %v813 = vpack.c.b16 %v782, %v781
        %v814 = vpack.c.b16 %v784, %v783
        %v815 = vpack.c.b16 %v786, %v785
        %v816 = vpack.c.b16 %v788, %v787
        %v817 = vpack.c.b16 %v790, %v789
        %v818 = vpack.c.b16 %v792, %v791
        %v819 = vpack.c.b16 %v794, %v793
        %v820 = vpack.c.b16 %v796, %v795
        %845 = vmatprep.subr.bf16.mxu0 0
        %846 = vmatpush1.bf16.msra.mxu0 %v797
        %847 = vmatprep.subr.bf16.mxu0 0
        %848 = vmatpush1.bf16.msra.mxu0 %v798
        %849 = vmatprep.subr.bf16.mxu0 0
        %850 = vmatpush1.bf16.msra.mxu0 %v799
        %851 = vmatprep.subr.bf16.mxu0 0
        %852 = vmatpush1.bf16.msra.mxu0 %v800
        %853 = vmatprep.subr.bf16.mxu0 0
        %854 = vmatpush1.bf16.msra.mxu0 %v801
        %855 = vmatprep.subr.bf16.mxu0 0
        %856 = vmatpush1.bf16.msra.mxu0 %v802
        %857 = vmatprep.subr.bf16.mxu0 0
        %858 = vmatpush1.bf16.msra.mxu0 %v803
        %859 = vmatprep.subr.bf16.mxu0 0
        %860 = vmatpush1.bf16.msra.mxu0 %v804
        %861 = vmatprep.subr.bf16.mxu0 0
        %862 = vmatpush1.bf16.msra.mxu0 %v805
        %863 = vmatprep.subr.bf16.mxu0 0
        %864 = vmatpush1.bf16.msra.mxu0 %v806
        %865 = vmatprep.subr.bf16.mxu0 0
        %866 = vmatpush1.bf16.msra.mxu0 %v807
        %867 = vmatprep.subr.bf16.mxu0 0
        %868 = vmatpush1.bf16.msra.mxu0 %v808
        %869 = vmatprep.subr.bf16.mxu0 0
        %870 = vmatpush1.bf16.msra.mxu0 %v809
        %871 = vmatprep.subr.bf16.mxu0 0
        %872 = vmatpush1.bf16.msra.mxu0 %v810
        %873 = vmatprep.subr.bf16.mxu0 0
        %874 = vmatpush1.bf16.msra.mxu0 %v811
        %875 = vmatprep.subr.bf16.mxu0 0
        %876 = vmatpush1.bf16.msra.mxu0 %v812
        %877 = vmatprep.mubr.bf16.mxu0 %v651
        %878 = vmatmul.mubr.bf16.gmra.mrb[0].mxu0 %v650
        %v879 = vpop.f32.mrb[0].mxu0
        %v880 = vadd.f32 0.0, %v879
        %v881 = vpop.f32.mrb[0].mxu0
        %v882 = vpop.f32.mrb[0].mxu0
        %v883 = vadd.f32 0.0, %v882
        %v884 = vpop.f32.mrb[0].mxu0
        %885 = vdwg.mxu0
        %886 = vmatprep.subr.bf16.mxu0 0
        %887 = vmatpush1.bf16.msra.mxu0 %v813
        %888 = vmatprep.subr.bf16.mxu0 0
        %889 = vmatpush1.bf16.msra.mxu0 %v814
        %890 = vmatprep.subr.bf16.mxu0 0
        %891 = vmatpush1.bf16.msra.mxu0 %v815
        %892 = vmatprep.subr.bf16.mxu0 0
        %893 = vmatpush1.bf16.msra.mxu0 %v816
        %894 = vmatprep.subr.bf16.mxu0 0
        %895 = vmatpush1.bf16.msra.mxu0 %v817
        %896 = vmatprep.subr.bf16.mxu0 0
        %897 = vmatpush1.bf16.msra.mxu0 %v818
        %898 = vmatprep.subr.bf16.mxu0 0
        %899 = vmatpush1.bf16.msra.mxu0 %v819
        %900 = vmatprep.subr.bf16.mxu0 0
        %901 = vmatpush1.bf16.msra.mxu0 %v820
        %902 = vmatprep.subr.bf16.mxu0 0
        %903 = vmatpush1.bf16.msra.mxu0 0
        %904 = vmatprep.subr.bf16.mxu0 0
        %905 = vmatpush1.bf16.msra.mxu0 0
        %906 = vmatprep.subr.bf16.mxu0 0
        %907 = vmatpush1.bf16.msra.mxu0 0
        %908 = vmatprep.subr.bf16.mxu0 0
        %909 = vmatpush1.bf16.msra.mxu0 0
        %910 = vmatprep.subr.bf16.mxu0 0
        %911 = vmatpush1.bf16.msra.mxu0 0
        %912 = vmatprep.subr.bf16.mxu0 0
        %913 = vmatpush1.bf16.msra.mxu0 0
        %914 = vmatprep.subr.bf16.mxu0 0
        %915 = vmatpush1.bf16.msra.mxu0 0
        %916 = vmatprep.subr.bf16.mxu0 0
        %917 = vmatpush1.bf16.msra.mxu0 0
        %918 = vmatprep.mubr.bf16.mxu0 0
        %919 = vmatmul.mubr.bf16.gmra.mrb[0].mxu0 %v652
        %v920 = vpop.f32.mrb[0].mxu0
        %v921 = vadd.f32 %v880, %v920
        %v922 = vpop.f32.mrb[0].mxu0
        %v923 = vpop.f32.mrb[0].mxu0
        %v924 = vadd.f32 %v883, %v923
        %v925 = vpop.f32.mrb[0].mxu0
        %926 = vdwg.mxu0
        %v927 = vadd.f32 %v648, %v921
        %v928 = vadd.f32 %v649, %v924
        %929 = vst [vmem:[%s358] sm:$0xff] %v927
        %930 = vst [vmem:[%s358 + $0x8] sm:$0xff] %v928
        // Predicated region
        $region53: #{_sae_forward.1} parent=39 // pred_check
          %p931 = pneg %p361
        $region54: #{_sae_forward.1} parent=39 // pred_check_branch
          %933 = sbr.rel (%p931) target = $region56
        $region55: #{_sae_forward.1} parent=39 // pred_region
          %v934 = vld [vmem:[%s358] sm:$0xff]
          %v935 = vld [vmem:[%s358 + $0x8] sm:$0xff]
          %v936 = vld [vmem:[%s4] sm:$0x1]
          %v938 = vlaneseq
          %v939 = vshrl.u32 %v938, 7
          %v940 = vsub.s32 0, %v939
          %v941 = vrot.slane %v936, %v940
          %v943 = vadd.f32 %v934, %v941
          %v944 = vadd.f32 %v935, %v941
          %945 = vst [vmem:[%s358] sm:$0xff] %v943
          %946 = vst [vmem:[%s358 + $0x8] sm:$0xff] %v944
        $region56: #{_sae_forward.1} parent=39 // pred_fallthru
          _
        %s947 = smul.u32 2, %s24
        %s948 = smul.u32 3, %s25
        %p949 = scmp.lt.s32.totalorder %s947, 3
        %s950 = scalar_select %p949, %s947, 3
        %p951 = scmp.lt.s32.totalorder %s948, 2
        %s952 = scalar_select %p951, %s948, 2
        %s953 = smul.addr %s950, 3
        %s954 = sadd.s32 %s952, %s953
        %s955 = smul.addr %s954, 8
        %s956 = scalar_lea.vmem %s5, %s955
        %s957 = smul.u32 2, %s24
        %p958 = scmp.lt.s32.totalorder %s957, 3
        %s959 = scalar_select %p958, %s957, 3
        %s960 = smul.addr %s959, 8
        %s961 = scalar_lea.vmem %s6, %s960
        // Predicated region
        $region57: #{_sae_forward.1} parent=39 // pred_check
          %p962 = pneg %p177
        $region58: #{_sae_forward.1} parent=39 // pred_check_branch
          %964 = sbr.rel (%p962) target = $region60
        $region59: #{_sae_forward.1} parent=39 // pred_region
          %s965 = smul.u32 2, %s24
          %s966 = smul.u32 3, %s25
        $region60: #{_sae_forward.1} parent=39 // pred_fallthru
          _
        // Predicated region
        $region61: #{_sae_forward.1} parent=39 // pred_check
          %p967 = pneg %p203
        $region62: #{_sae_forward.1} parent=39 // pred_check_branch
          %969 = sbr.rel (%p967) target = $region64
        $region63: #{_sae_forward.1} parent=39 // pred_region
          %s970 = smul.u32 2, %s24
        $region64: #{_sae_forward.1} parent=39 // pred_fallthru
          _
      $region40: #{_sae_forward.1} parent=5 // pred_fallthru
        _
      %p971 = scmp.le.s32.totalorder 2, %s15
      // Predicated region
      $region65: #{_sae_forward.1} parent=5 // pred_check
        %p972 = pneg %p971
      $region66: #{_sae_forward.1} parent=5 // pred_check_branch
        %974 = sbr.rel (%p972) target = $region68
      $region67: #{_sae_forward.1} parent=5 // pred_region
        %s975 = ssub.s32 %s15, 2
        // Predicated region
        $region69: #{_sae_forward.1} parent=67 // pred_check
          %p976 = pneg %p183
        $region70: #{_sae_forward.1} parent=67 // pred_check_branch
          %978 = sbr.rel (%p976) target = $region72
        $region71: #{_sae_forward.1} parent=67 // pred_region
          %s979 = smul.u32 2, %s26
          %s980 = smul.u32 3, %s27
          %p981 = scmp.lt.s32.totalorder %s979, 3
          %s982 = scalar_select %p981, %s979, 3
          %p983 = scmp.lt.s32.totalorder %s980, 2
          %s984 = scalar_select %p983, %s980, 2
          %s985 = smul.addr %s982, 3
          %s986 = sadd.s32 %s984, %s985
          %s987 = smul.addr %s986, 8
          %s988 = scalar_lea.vmem %s5, %s987
        $region72: #{_sae_forward.1} parent=67 // pred_fallthru
          _
        // Predicated region
        $region73: #{_sae_forward.1} parent=67 // pred_check
          %p989 = pneg %p209
        $region74: #{_sae_forward.1} parent=67 // pred_check_branch
          %991 = sbr.rel (%p989) target = $region76
        $region75: #{_sae_forward.1} parent=67 // pred_region
          %s992 = smul.u32 2, %s26
          %p993 = scmp.lt.s32.totalorder %s992, 3
          %s994 = scalar_select %p993, %s992, 3
          %s995 = smul.addr %s994, 8
          %s996 = scalar_lea.vmem %s6, %s995
        $region76: #{_sae_forward.1} parent=67 // pred_fallthru
          _
      $region68: #{_sae_forward.1} parent=5 // pred_fallthru
        _
    $region6: #{_sae_forward.1} parent=1 // loop_footer
      %s19 = sadd.s32 1, %s15
    $region7: #{_sae_forward.1} parent=1 // loop_footer_branch
      %14 = sbr.rel target = $region3
    $region8: #{_sae_forward.1} parent=1 // loop_exit
      _
    %997 = vsyncpa [#allocation3], 1
    %s998 = scalar_lea.sflag [#allocation3], 1
    %999 = vsyncpa %s998, 1
    %1000 = vsyncpa [#allocation5], 1

</llo_original>
